<compile_context>
chip_gen: v5e
topology: v5e:2x2
jax: 0.10.0
libtpu: 0.0.40
codegen_flags: <defaults>
</compile_context>

<pallas_src>
import functools

import jax
import jax.numpy as jnp
from jax.experimental import pallas as pl
from jax.experimental.pallas import tpu as pltpu


def _upconv_kernel(x_ref, a_ref, r_ref, b_ref, o_ref, *, K, CW):
    # x_ref: (1, H, Cin*W)     input for this batch element, channel-last layout
    # a_ref: (Cin*W, K*CW)     folded [width gather (upsample+reflect+kw) x conv weight]
    # r_ref: (1, K, TH, H)     per-kh one-hot row gather (upsample+reflect+kh), this tile
    # b_ref: (1, CW)           bias pre-broadcast over Wout (CW = Cout*Wout)
    # o_ref: (1, TH, CW)       lane-dense output tile
    x2 = x_ref[0]                                                     # (H, Cin*W)

    # One MXU dot: folds the width gather and the (Cin, kw) weight contraction.
    y = jnp.dot(x2, a_ref[...], preferred_element_type=jnp.float32)  # (H, K*CW)
    y = y.astype(r_ref.dtype)  # no-op in the default f32 path

    # Per-kh row gather + kh sum: K small MXU dots accumulating (TH, CW).
    acc = b_ref[...].astype(jnp.float32)                             # (1, CW), broadcasts
    for kh in range(K):
        acc = acc + jnp.dot(r_ref[0, kh], y[:, kh * CW:(kh + 1) * CW],
                            preferred_element_type=jnp.float32)      # (TH, CW)

    o_ref[0] = acc.astype(o_ref.dtype)


def upsample_conv_layer(x_nchw, weight_oihw, bias, *, kernel_size, stride=1,
                        upsample=None, use_bf16_tables=False):
    """Pallas implementation of UpsampleConvLayer.forward (stride must be 1)."""
    assert stride == 1, "only stride=1 supported"

    N, Cin, H, W = x_nchw.shape
    Cout = weight_oihw.shape[0]
    K = int(kernel_size)
    pad = K // 2
    up = int(upsample) if upsample else 1

    Hup, Wup = H * up, W * up
    assert pad < Hup and pad < Wup, "reflection pad must be < upsampled size"
    Hp, Wp = Hup + 2 * pad, Wup + 2 * pad
    Hout, Wout = Hp - K + 1, Wp - K + 1
    CW = Cout * Wout  # lane-dense if a multiple of 128 (perf-only otherwise)

    # Largest row tile (fewest grid steps).  Split rows only at batch == 1 so a
    # second "parallel" grid step exists to feed v7x's two TensorCores.
    if N == 1 and Hout % 2 == 0 and (Hout // 2) % 8 == 0:
        TH, NT = Hout // 2, 2
    else:
        TH, NT = Hout, 1

    out_dtype = x_nchw.dtype
    tab_dtype = jnp.bfloat16 if use_bf16_tables else jnp.float32

    def reflect(idx, size):
        i = idx - pad
        i = jnp.where(i < 0, -i, i)
        i = jnp.where(i >= size, 2 * (size - 1) - i, i)
        return i

    # --- fold upsample + reflection pad + kw taps + conv weights into A ------
    # src_w[j, q] = input column feeding output column q through tap kw=j.
    src_w = reflect(jnp.arange(Wout)[None, :] + jnp.arange(K)[:, None], Wup) // up   # (K, Wout)
    sw1 = (jnp.arange(W)[None, :, None] == src_w[:, None, :]).astype(jnp.float32)    # (K, W, Wout)
    # A[c, w, kh, o, q] = sum_kw weight[o, c, kh, kw] * [w == src_w[kw, q]]
    a_tab = jnp.einsum('ocij,jwq->cwioq', weight_oihw.astype(jnp.float32), sw1)
    a_tab = a_tab.reshape(Cin * W, K * CW).astype(tab_dtype)

    # --- per-kh one-hot row gather (upsample + reflect + kh), per row tile ---
    src_h = reflect(jnp.arange(Hout)[None, :] + jnp.arange(K)[:, None], Hup) // up   # (K, Hout)
    src_h = src_h.reshape(K, NT, TH).transpose(1, 0, 2)                              # (NT, K, TH)
    r_tab = (src_h[..., None] == jnp.arange(H)).astype(tab_dtype)                    # (NT, K, TH, H)

    # Bias pre-broadcast over Wout so it adds directly onto the (TH, CW) acc.
    b_row = jnp.repeat(bias.astype(jnp.float32), Wout).reshape(1, CW)

    # Channel-last input layout so the channel contraction rides the first dot
    # (review: "present x as (H, Cin*W)"); tiny transpose of the raw input.
    x_hcw = x_nchw.transpose(0, 2, 1, 3).reshape(N, H, Cin * W).astype(tab_dtype)

    kernel = functools.partial(_upconv_kernel, K=K, CW=CW)

    out3 = pl.pallas_call(
        kernel,
        out_shape=jax.ShapeDtypeStruct((N, Hout, CW), out_dtype),
        grid=(N, NT),
        in_specs=[
            pl.BlockSpec((1, H, Cin * W), lambda n, t: (n, 0, 0)),
            pl.BlockSpec((Cin * W, K * CW), lambda n, t: (0, 0)),
            pl.BlockSpec((1, K, TH, H), lambda n, t: (t, 0, 0, 0)),
            pl.BlockSpec((1, CW), lambda n, t: (0, 0)),
        ],
        out_specs=pl.BlockSpec((1, TH, CW), lambda n, t: (n, t, 0)),
        compiler_params=pltpu.CompilerParams(
            dimension_semantics=("parallel", "parallel")),
    )(x_hcw, a_tab, r_tab, b_row)

    # (N, Hout, Cout*Wout) -> NCHW.  Tiny (tens of KB) layout op outside the kernel.
    return out3.reshape(N, Hout, Cout, Wout).transpose(0, 2, 1, 3)


if __name__ == "__main__":
    # Module config (consistent with viewmaker usage): upsample + 3x3 conv, stride 1
    in_channels, out_channels, kernel_size, stride, upsample = 4, 8, 3, 1, 2

    key = jax.random.PRNGKey(0)
    kx, kw_, kb = jax.random.split(key, 3)

    x = jax.random.normal(kx, (2, in_channels, 16, 16), dtype=jnp.float32)
    weight = jax.random.normal(
        kw_, (out_channels, in_channels, kernel_size, kernel_size),
        dtype=jnp.float32) * 0.1
    bias = jax.random.normal(kb, (out_channels,), dtype=jnp.float32) * 0.1

    out = upsample_conv_layer(x, weight, bias, kernel_size=kernel_size,
                              stride=stride, upsample=upsample)
    out = jax.block_until_ready(out)

    # Reference: XLA conv on the explicitly upsampled + reflection-padded input.
    pad = kernel_size // 2
    x_up = jnp.repeat(jnp.repeat(x, upsample, axis=2), upsample, axis=3)
    x_pad = jnp.pad(x_up, ((0, 0), (0, 0), (pad, pad), (pad, pad)), mode="reflect")
    ref = jax.lax.conv_general_dilated(
        x_pad, weight, window_strides=(stride, stride), padding="VALID",
        dimension_numbers=("NCHW", "OIHW", "NCHW")) + bias[None, :, None, None]
    ref = jax.block_until_ready(ref)

    assert out.shape == (2, out_channels, 16 * upsample, 16 * upsample), out.shape
    assert jnp.allclose(out, ref, atol=1e-4, rtol=1e-4), float(
        jnp.max(jnp.abs(out - ref)))

    print("KERNEL_OK")
</pallas_src>

<mosaic_0001>
module attributes {stable_mosaic.version = 11 : i64} {
  func.func @_upconv_kernel(%arg0: i32, %arg1: i32, %arg2: memref<1x16x64xf32, #tpu.memory_space<vmem>>, %arg3: memref<64x768xf32, #tpu.memory_space<vmem>>, %arg4: memref<1x3x32x16xf32, #tpu.memory_space<vmem>>, %arg5: memref<1x256xf32, #tpu.memory_space<vmem>>, %arg6: memref<1x32x256xf32, #tpu.memory_space<vmem>>) attributes {dimension_semantics = [#tpu.dimension_semantics<parallel>, #tpu.dimension_semantics<parallel>], iteration_bounds = array<i64: 2, 1>, scalar_prefetch = 0 : i64, scratch_operands = 0 : i64, tpu.core_type = #tpu.core_type<tc>, window_params = [{transform_indices = @transform_0, window_bounds = array<i64: 1, 16, 64>}, {pipeline_mode = #tpu.pipeline_mode<synchronous>, transform_indices = @transform_1, window_bounds = array<i64: 64, 768>}, {transform_indices = @transform_2, window_bounds = array<i64: 1, 3, 32, 16>}, {pipeline_mode = #tpu.pipeline_mode<synchronous>, transform_indices = @transform_3, window_bounds = array<i64: 1, 256>}, {transform_indices = @transform_4, window_bounds = array<i64: 1, 32, 256>}]} {
    %c0 = arith.constant 0 : index
    %c0_0 = arith.constant 0 : index
    %c0_1 = arith.constant 0 : index
    %0 = vector.load %arg2[%c0, %c0_0, %c0_1] : memref<1x16x64xf32, #tpu.memory_space<vmem>>, vector<1x16x64xf32>
    %1 = vector.shape_cast %0 : vector<1x16x64xf32> to vector<16x64xf32>
    %c0_2 = arith.constant 0 : index
    %c0_3 = arith.constant 0 : index
    %2 = vector.load %arg3[%c0_2, %c0_3] : memref<64x768xf32, #tpu.memory_space<vmem>>, vector<64x768xf32>
    %cst = arith.constant dense<0.000000e+00> : vector<16x768xf32>
    %3 = tpu.matmul %1, %2, %cst {dimension_numbers = #tpu.dot_dimension_numbers<[1], [0], [0], [1], [0, 0, 1, 1], [], []>} : vector<16x64xf32>, vector<64x768xf32>, vector<16x768xf32> -> vector<16x768xf32>
    %c0_4 = arith.constant 0 : index
    %c0_5 = arith.constant 0 : index
    %4 = vector.load %arg5[%c0_4, %c0_5] : memref<1x256xf32, #tpu.memory_space<vmem>>, vector<1x256xf32>
    %c0_6 = arith.constant 0 : index
    %c0_7 = arith.constant 0 : index
    %c0_8 = arith.constant 0 : index
    %c0_9 = arith.constant 0 : index
    %5 = vector.load %arg4[%c0_6, %c0_7, %c0_8, %c0_9] : memref<1x3x32x16xf32, #tpu.memory_space<vmem>>, vector<1x1x32x16xf32>
    %6 = vector.shape_cast %5 : vector<1x1x32x16xf32> to vector<32x16xf32>
    %7 = vector.extract_strided_slice %3 {offsets = [0, 0], sizes = [16, 256], strides = [1, 1]} : vector<16x768xf32> to vector<16x256xf32>
    %cst_10 = arith.constant dense<0.000000e+00> : vector<32x256xf32>
    %8 = tpu.matmul %6, %7, %cst_10 {dimension_numbers = #tpu.dot_dimension_numbers<[1], [0], [0], [1], [0, 0, 1, 1], [], []>} : vector<32x16xf32>, vector<16x256xf32>, vector<32x256xf32> -> vector<32x256xf32>
    %9 = vector.broadcast %4 : vector<1x256xf32> to vector<32x256xf32>
    %10 = arith.addf %9, %8 : vector<32x256xf32>
    %c0_11 = arith.constant 0 : index
    %c1 = arith.constant 1 : index
    %c0_12 = arith.constant 0 : index
    %c0_13 = arith.constant 0 : index
    %11 = vector.load %arg4[%c0_11, %c1, %c0_12, %c0_13] : memref<1x3x32x16xf32, #tpu.memory_space<vmem>>, vector<1x1x32x16xf32>
    %12 = vector.shape_cast %11 : vector<1x1x32x16xf32> to vector<32x16xf32>
    %13 = vector.extract_strided_slice %3 {offsets = [0, 256], sizes = [16, 256], strides = [1, 1]} : vector<16x768xf32> to vector<16x256xf32>
    %cst_14 = arith.constant dense<0.000000e+00> : vector<32x256xf32>
    %14 = tpu.matmul %12, %13, %cst_14 {dimension_numbers = #tpu.dot_dimension_numbers<[1], [0], [0], [1], [0, 0, 1, 1], [], []>} : vector<32x16xf32>, vector<16x256xf32>, vector<32x256xf32> -> vector<32x256xf32>
    %15 = arith.addf %10, %14 : vector<32x256xf32>
    %c0_15 = arith.constant 0 : index
    %c2 = arith.constant 2 : index
    %c0_16 = arith.constant 0 : index
    %c0_17 = arith.constant 0 : index
    %16 = vector.load %arg4[%c0_15, %c2, %c0_16, %c0_17] : memref<1x3x32x16xf32, #tpu.memory_space<vmem>>, vector<1x1x32x16xf32>
    %17 = vector.shape_cast %16 : vector<1x1x32x16xf32> to vector<32x16xf32>
    %18 = vector.extract_strided_slice %3 {offsets = [0, 512], sizes = [16, 256], strides = [1, 1]} : vector<16x768xf32> to vector<16x256xf32>
    %cst_18 = arith.constant dense<0.000000e+00> : vector<32x256xf32>
    %19 = tpu.matmul %17, %18, %cst_18 {dimension_numbers = #tpu.dot_dimension_numbers<[1], [0], [0], [1], [0, 0, 1, 1], [], []>} : vector<32x16xf32>, vector<16x256xf32>, vector<32x256xf32> -> vector<32x256xf32>
    %20 = arith.addf %15, %19 : vector<32x256xf32>
    %c0_19 = arith.constant 0 : index
    %c0_20 = arith.constant 0 : index
    %c0_21 = arith.constant 0 : index
    %21 = vector.load %arg6[%c0_19, %c0_20, %c0_21] : memref<1x32x256xf32, #tpu.memory_space<vmem>>, vector<1x32x256xf32>
    %22 = vector.shape_cast %21 : vector<1x32x256xf32> to vector<32x256xf32>
    %23 = vector.shape_cast %20 : vector<32x256xf32> to vector<1x32x256xf32>
    tpu.vector_store %arg6[%c0_19, %c0_20, %c0_21], %23 {strides = array<i32>} : memref<1x32x256xf32, #tpu.memory_space<vmem>>, vector<1x32x256xf32>,
    return
  }
  func.func @transform_0(%arg0: i32, %arg1: i32) -> (i32, i32, i32) {
    %c0_i32 = arith.constant 0 : i32
    %c0_i32_0 = arith.constant 0 : i32
    %c0_i32_1 = arith.constant 0 : i32
    return %arg0, %c0_i32, %c0_i32_0 : i32, i32, i32
  }
  func.func @transform_1(%arg0: i32, %arg1: i32) -> (i32, i32) {
    %c0_i32 = arith.constant 0 : i32
    %c0_i32_0 = arith.constant 0 : i32
    %c0_i32_1 = arith.constant 0 : i32
    return %c0_i32, %c0_i32_0 : i32, i32
  }
  func.func @transform_2(%arg0: i32, %arg1: i32) -> (i32, i32, i32, i32) {
    %c0_i32 = arith.constant 0 : i32
    %c0_i32_0 = arith.constant 0 : i32
    %c0_i32_1 = arith.constant 0 : i32
    %c0_i32_2 = arith.constant 0 : i32
    return %arg1, %c0_i32, %c0_i32_0, %c0_i32_1 : i32, i32, i32, i32
  }
  func.func @transform_3(%arg0: i32, %arg1: i32) -> (i32, i32) {
    %c0_i32 = arith.constant 0 : i32
    %c0_i32_0 = arith.constant 0 : i32
    %c0_i32_1 = arith.constant 0 : i32
    return %c0_i32, %c0_i32_0 : i32, i32
  }
  func.func @transform_4(%arg0: i32, %arg1: i32) -> (i32, i32, i32) {
    %c0_i32 = arith.constant 0 : i32
    %c0_i32_0 = arith.constant 0 : i32
    return %arg0, %arg1, %c0_i32 : i32, i32, i32
  }
}

</mosaic_0001>

<llo_original>
// kernel: tpu_custom_call.1
$region0: #{tpu_custom_call.1}
  #allocation0 [shape = 'u32[]', space=smem, size = 0x4, offset = 0x4, fixed_abs, tag = 'smem constant byte address 0x4 - core index']
  #allocation1 [shape = 'u32[72,128]{1,0:T(1,128)}', space=vmem, size = 0x9000, scoped, tag = 'internal scratch']
  %s0 = inlined_call_operand.vmem [shape: f32[2,16,64], index: 0, kind: input, shape index: {}]
  %s1 = inlined_call_operand.hbm [shape: f32[64,768], index: 1, kind: input, shape index: {}]
  %s2 = inlined_call_operand.vmem [shape: f32[1,3,32,16], index: 2, kind: input, shape index: {}]
  %s3 = inlined_call_operand.vmem [shape: f32[1,256], index: 3, kind: input, shape index: {}]
  %s4 = inlined_call_operand.hbm [shape: f32[2,32,256], index: 4, kind: output, shape index: {}]
  %s5 = sld [smem:[#allocation0]]
  $region53: #{tpu_custom_call.1} parent=0
    _
  %s7 = ssub.s32 1, %s5
  %s8 = scalar_select 0, %s7, %s5
  $region1: #{tpu_custom_call.1} parent=0
    #allocation2 [shape = 'u8[196608]{0}', space=vmem, size = 0x30000, scoped, tag = 'input window, operand 1, single buffered']
    #allocation3 [shape = 's32[2]{0}', space=sflag, size = 0x8, scoped, tag = 'scoped memory for tpu_custom_call.1']
    #allocation4 [shape = 's32[2]{0}', space=sflag, size = 0x8, scoped, tag = 'scoped memory for tpu_custom_call.1']
    #allocation5 [shape = 'u8[65536]{0}', space=vmem, size = 0x10000, scoped, tag = 'output window, operand 0']
    %9 = vsyncpa [#allocation3], 0
    %10 = vsyncpa [#allocation4], 0
    %s11 = scalar_lea.sflag [#allocation4], 1
    %12 = vsyncpa %s11, 0
    loop: start=0, step=1, limit=4
    $region2: #{tpu_custom_call.1} parent=1 // loop_pre_header
      _
    $region3: #{tpu_custom_call.1} parent=1 // loop_header
      %s14 = sphi 0, %s18
      %p15 = scmp.ge.s32.totalorder %s14, 4
      %s21 = sphi 0, %s33
      %s22 = sphi 0, %s29
      %s23 = sphi 0, %s21
      %s24 = sphi 0, %s22
      %s25 = sphi 0, %s23
      %s26 = sphi 0, %s24
      %s36 = sphi 0, %s38
      %s39 = sphi 0, %s36
      %s40 = sphi 0, %s39
      %s56 = sphi 0, %s40
      %s60 = sphi 0, %s60
      %s62 = sphi 0, %s60
      %s63 = sphi 0, %s62
      %s77 = sphi 0, %s63
      %s83 = sphi 0, %s85
      %s86 = sphi 0, %s83
      %s87 = sphi 0, %s86
      %s103 = sphi 0, %s87
      %s107 = sphi 0, %s107
      %s109 = sphi 0, %s107
      %s110 = sphi 0, %s109
      %s124 = sphi 0, %s110
      %s132 = sphi 0, %s134
      %s135 = sphi 0, %s132
      %s136 = sphi 0, %s135
      %s152 = sphi 0, %s136
    $region4: #{tpu_custom_call.1} parent=1 // loop_header_branch
      %17 = sbr.rel (%p15) target = $region8
    $region5: #{tpu_custom_call.1} parent=1 // loop_body
      %s19 = ssub.s32 %s14, 1
      %s20 = ssub.s32 %s14, 2
      %s27 = sadd.s32 1, %s22
      %p28 = scmp.ge.s32.totalorder %s27, 1
      %s29 = scalar_select %p28, 0, %s27
      %s30 = sadd.s32 1, %s21
      %s31 = scalar_select %p28, %s30, %s21
      %p32 = scmp.ge.s32.totalorder %s31, 2
      %s33 = scalar_select %p32, 0, %s31
      %s34 = ssub.s32 %s21, %s33
      %p35 = scmp.eq.s32.totalorder %s34, 0
      %s37 = sadd.s32 %s36, 1
      %s38 = scalar_select %p35, %s36, %s37
      %p41 = pneg %p35
      %p42 = scmp.eq.s32.totalorder %s14, 1
      %p43 = por %p41, %p42
      %p44 = scmp.ne.s32.totalorder %s36, %s39
      %p45 = scmp.eq.s32.totalorder %s14, 0
      %p46 = por %p44, %p45
      %p47 = scmp.ne.s32.totalorder %s36, %s39
      %p48 = scmp.eq.s32.totalorder %s19, 1
      %p49 = por %p47, %p48
      %p50 = scmp.ne.s32.totalorder %s39, %s40
      %p51 = scmp.eq.s32.totalorder %s19, 0
      %p52 = por %p50, %p51
      %p53 = scmp.ne.s32.totalorder %s39, %s40
      %p54 = scmp.eq.s32.totalorder %s20, 1
      %p55 = por %p53, %p54
      %p57 = scmp.ne.s32.totalorder %s40, %s56
      %p58 = scmp.eq.s32.totalorder %s20, 0
      %p59 = por %p57, %p58
      %s61 = sadd.s32 %s60, 1
      %p64 = scmp.eq.s32.totalorder %s14, 1
      %p65 = scmp.ne.s32.totalorder %s60, %s62
      %p66 = scmp.eq.s32.totalorder %s14, 0
      %p67 = por %p65, %p66
      %p68 = scmp.ne.s32.totalorder %s60, %s62
      %p69 = scmp.eq.s32.totalorder %s19, 1
      %p70 = por %p68, %p69
      %p71 = scmp.ne.s32.totalorder %s62, %s63
      %p72 = scmp.eq.s32.totalorder %s19, 0
      %p73 = por %p71, %p72
      %p74 = scmp.ne.s32.totalorder %s62, %s63
      %p75 = scmp.eq.s32.totalorder %s20, 1
      %p76 = por %p74, %p75
      %p78 = scmp.ne.s32.totalorder %s63, %s77
      %p79 = scmp.eq.s32.totalorder %s20, 0
      %p80 = por %p78, %p79
      %s81 = ssub.s32 %s22, %s29
      %p82 = scmp.eq.s32.totalorder %s81, 0
      %s84 = sadd.s32 %s83, 1
      %s85 = scalar_select %p82, %s83, %s84
      %p88 = pneg %p82
      %p89 = scmp.eq.s32.totalorder %s14, 1
      %p90 = por %p88, %p89
      %p91 = scmp.ne.s32.totalorder %s83, %s86
      %p92 = scmp.eq.s32.totalorder %s14, 0
      %p93 = por %p91, %p92
      %p94 = scmp.ne.s32.totalorder %s83, %s86
      %p95 = scmp.eq.s32.totalorder %s19, 1
      %p96 = por %p94, %p95
      %p97 = scmp.ne.s32.totalorder %s86, %s87
      %p98 = scmp.eq.s32.totalorder %s19, 0
      %p99 = por %p97, %p98
      %p100 = scmp.ne.s32.totalorder %s86, %s87
      %p101 = scmp.eq.s32.totalorder %s20, 1
      %p102 = por %p100, %p101
      %p104 = scmp.ne.s32.totalorder %s87, %s103
      %p105 = scmp.eq.s32.totalorder %s20, 0
      %p106 = por %p104, %p105
      %s108 = sadd.s32 %s107, 1
      %p111 = scmp.eq.s32.totalorder %s14, 1
      %p112 = scmp.ne.s32.totalorder %s107, %s109
      %p113 = scmp.eq.s32.totalorder %s14, 0
      %p114 = por %p112, %p113
      %p115 = scmp.ne.s32.totalorder %s107, %s109
      %p116 = scmp.eq.s32.totalorder %s19, 1
      %p117 = por %p115, %p116
      %p118 = scmp.ne.s32.totalorder %s109, %s110
      %p119 = scmp.eq.s32.totalorder %s19, 0
      %p120 = por %p118, %p119
      %p121 = scmp.ne.s32.totalorder %s109, %s110
      %p122 = scmp.eq.s32.totalorder %s20, 1
      %p123 = por %p121, %p122
      %p125 = scmp.ne.s32.totalorder %s110, %s124
      %p126 = scmp.eq.s32.totalorder %s20, 0
      %p127 = por %p125, %p126
      %s128 = ssub.s32 %s21, %s33
      %s129 = ssub.s32 %s22, %s29
      %s130 = sor.u32 %s128, %s129
      %p131 = scmp.eq.s32.totalorder %s130, 0
      %s133 = sadd.s32 %s132, 1
      %s134 = scalar_select %p131, %s132, %s133
      %p137 = pneg %p131
      %p138 = scmp.eq.s32.totalorder %s14, 1
      %p139 = por %p137, %p138
      %p140 = scmp.ne.s32.totalorder %s132, %s135
      %p141 = scmp.eq.s32.totalorder %s14, 0
      %p142 = por %p140, %p141
      %p143 = scmp.ne.s32.totalorder %s132, %s135
      %p144 = scmp.eq.s32.totalorder %s19, 1
      %p145 = por %p143, %p144
      %p146 = scmp.ne.s32.totalorder %s135, %s136
      %p147 = scmp.eq.s32.totalorder %s19, 0
      %p148 = por %p146, %p147
      %p149 = scmp.ne.s32.totalorder %s135, %s136
      %p150 = scmp.eq.s32.totalorder %s20, 1
      %p151 = por %p149, %p150
      %p153 = scmp.ne.s32.totalorder %s136, %s152
      %p154 = scmp.eq.s32.totalorder %s20, 0
      %p155 = por %p153, %p154
      %p156 = scmp.le.s32.totalorder 1, %s14
      %p157 = scmp.lt.s32.totalorder %s14, 3
      %p158 = pnand %p156, %p157
      %p159 = pneg %p158
      // Predicated region
      $region9: #{tpu_custom_call.1} parent=5 // pred_check
        _
      $region10: #{tpu_custom_call.1} parent=5 // pred_check_branch
        %161 = sbr.rel (%p158) target = $region12
      $region11: #{tpu_custom_call.1} parent=5 // pred_region
        %s162 = ssub.s32 %s14, 1
        // Predicated region
        $region13: #{tpu_custom_call.1} parent=11 // pred_check
          %p163 = pneg %p73
        $region14: #{tpu_custom_call.1} parent=11 // pred_check_branch
          %165 = sbr.rel (%p163) target = $region16
        $region15: #{tpu_custom_call.1} parent=11 // pred_region
          %167 = vsyncadd [#allocation3], 0
          %s168 = sshll.u32 %s1, 4
          %s169 = int_to_ptr.hbm [resolvable:$true] %s168
          %s170 = sshll.u32 [#allocation2], 4
          %s171 = int_to_ptr.vmem [resolvable:$true] %s170
          %176 = dma.hbm_to_vmem [thread:$0]  %s169, 6144, %s171, [#allocation3], 768, 768, 48
        $region16: #{tpu_custom_call.1} parent=11 // pred_fallthru
          _
        // Predicated region
        $region17: #{tpu_custom_call.1} parent=11 // pred_check
          %p177 = pneg %p99
        $region18: #{tpu_custom_call.1} parent=11 // pred_check_branch
          %179 = sbr.rel (%p177) target = $region20
        $region19: #{tpu_custom_call.1} parent=11 // pred_region
          %p180 = scmp.lt.s32.totalorder %s24, 0
          %s181 = scalar_select %p180, %s24, 0
          %s182 = smul.addr %s181, 12
          %s183 = smul.addr %s182, 8
          %s184 = scalar_lea.vmem %s2, %s183
        $region20: #{tpu_custom_call.1} parent=11 // pred_fallthru
          _
        // Predicated region
        $region21: #{tpu_custom_call.1} parent=11 // pred_check
          %p185 = pneg %p120
        $region22: #{tpu_custom_call.1} parent=11 // pred_check_branch
          %187 = sbr.rel (%p185) target = $region24
        $region23: #{tpu_custom_call.1} parent=11 // pred_region
          _
        $region24: #{tpu_custom_call.1} parent=11 // pred_fallthru
          _
      $region12: #{tpu_custom_call.1} parent=5 // pred_fallthru
        _
      %p188 = scmp.lt.s32.totalorder %s14, 2
      // Predicated region
      $region25: #{tpu_custom_call.1} parent=5 // pred_check
        %p189 = pneg %p188
      $region26: #{tpu_custom_call.1} parent=5 // pred_check_branch
        %191 = sbr.rel (%p189) target = $region28
      $region27: #{tpu_custom_call.1} parent=5 // pred_region
        // Predicated region
        $region29: #{tpu_custom_call.1} parent=27 // pred_check
          %p192 = pneg %p46
        $region30: #{tpu_custom_call.1} parent=27 // pred_check_branch
          %194 = sbr.rel (%p192) target = $region32
        $region31: #{tpu_custom_call.1} parent=27 // pred_region
          %p195 = scmp.lt.s32.totalorder %s21, 1
          %s196 = scalar_select %p195, %s21, 1
          %s197 = smul.addr %s196, 2
          %s198 = smul.addr %s197, 8
          %s199 = scalar_lea.vmem %s0, %s198
        $region32: #{tpu_custom_call.1} parent=27 // pred_fallthru
          _
      $region28: #{tpu_custom_call.1} parent=5 // pred_fallthru
        _
      %p200 = scmp.le.s32.totalorder 1, %s14
      %p201 = scmp.lt.s32.totalorder %s14, 3
      %p202 = pnand %p200, %p201
      %p203 = pneg %p202
      // Predicated region
      $region33: #{tpu_custom_call.1} parent=5 // pred_check
        _
      $region34: #{tpu_custom_call.1} parent=5 // pred_check_branch
        %205 = sbr.rel (%p202) target = $region36
      $region35: #{tpu_custom_call.1} parent=5 // pred_region
        %s206 = ssub.s32 %s14, 1
        // Predicated region
        $region37: #{tpu_custom_call.1} parent=35 // pred_check
          %p207 = pneg %p73
        $region38: #{tpu_custom_call.1} parent=35 // pred_check_branch
          %209 = sbr.rel (%p207) target = $region40
        $region39: #{tpu_custom_call.1} parent=35 // pred_region
          %211 = dma.done [#allocation3], 6144
        $region40: #{tpu_custom_call.1} parent=35 // pred_fallthru
          _
        %p212 = scmp.lt.s32.totalorder %s23, 1
        %s213 = scalar_select %p212, %s23, 1
        %s214 = smul.addr %s213, 2
        %s215 = smul.addr %s214, 8
        %s216 = scalar_lea.vmem %s0, %s215
        %p217 = pneg %p52
        %p218 = pneg %p49
        %p219 = pneg %p73
        %p220 = pneg %p70
        %p221 = scmp.lt.s32.totalorder %s24, 0
        %s222 = scalar_select %p221, %s24, 0
        %s223 = smul.addr %s222, 12
        %s224 = smul.addr %s223, 8
        %s225 = scalar_lea.vmem %s2, %s224
        %p226 = pneg %p99
        %p227 = pneg %p96
        %p228 = pneg %p120
        %p229 = pneg %p117
        %p230 = pneg %p148
        %p231 = pneg %p145
        %s232 = sand.u32 %s135, 1
        %s233 = scalar_lea.sflag [#allocation4], %s232
        %s234 = sand.u32 %s135, 1
        %s235 = smul.addr %s234, 64
        %s236 = scalar_lea.vmem [#allocation5], %s235
        %p237 = scmp.lt.s32.totalorder %s23, 1
        %s238 = scalar_select %p237, %s23, 1
        %s239 = smul.addr %s238, 2
        %s240 = smul.addr %s239, 8
        %s241 = scalar_lea.vmem %s0, %s240
        %p242 = scmp.lt.s32.totalorder %s24, 0
        %s243 = scalar_select %p242, %s24, 0
        %s244 = smul.addr %s243, 12
        %s245 = smul.addr %s244, 8
        %s246 = scalar_lea.vmem %s2, %s245
        %s247 = smul.u32 4, %s24
        %v248 = vld [vmem:[%s241] sm:$0xff]
        %v249 = vld [vmem:[%s241 + $0x8] sm:$0xff]
        %v250 = vld [vmem:[#allocation2] sm:$0xff]
        %v251 = vld [vmem:[#allocation2 + $0x8] sm:$0xff]
        %v252 = vld [vmem:[#allocation2 + $0x10] sm:$0xff]
        %v253 = vld [vmem:[#allocation2 + $0x18] sm:$0xff]
        %v254 = vld [vmem:[#allocation2 + $0x20] sm:$0xff]
        %v255 = vld [vmem:[#allocation2 + $0x28] sm:$0xff]
        %v256 = vld [vmem:[#allocation2 + $0x30] sm:$0xff]
        %v257 = vld [vmem:[#allocation2 + $0x38] sm:$0xff]
        %v258 = vld [vmem:[#allocation2 + $0x40] sm:$0xff]
        %v259 = vld [vmem:[#allocation2 + $0x48] sm:$0xff]
        %v260 = vld [vmem:[#allocation2 + $0x50] sm:$0xff]
        %v261 = vld [vmem:[#allocation2 + $0x58] sm:$0xff]
        %v262 = vld [vmem:[#allocation2 + $0x60] sm:$0xff]
        %v263 = vld [vmem:[#allocation2 + $0x68] sm:$0xff]
        %v264 = vld [vmem:[#allocation2 + $0x70] sm:$0xff]
        %v265 = vld [vmem:[#allocation2 + $0x78] sm:$0xff]
        %v266 = vld [vmem:[#allocation2 + $0x80] sm:$0xff]
        %v267 = vld [vmem:[#allocation2 + $0x88] sm:$0xff]
        %v268 = vld [vmem:[#allocation2 + $0x90] sm:$0xff]
        %v269 = vld [vmem:[#allocation2 + $0x98] sm:$0xff]
        %v270 = vld [vmem:[#allocation2 + $0xa0] sm:$0xff]
        %v271 = vld [vmem:[#allocation2 + $0xa8] sm:$0xff]
        %v272 = vld [vmem:[#allocation2 + $0xb0] sm:$0xff]
        %v273 = vld [vmem:[#allocation2 + $0xb8] sm:$0xff]
        %v274 = vld [vmem:[#allocation2 + $0xc0] sm:$0xff]
        %v275 = vld [vmem:[#allocation2 + $0xc8] sm:$0xff]
        %v276 = vld [vmem:[#allocation2 + $0xd0] sm:$0xff]
        %v277 = vld [vmem:[#allocation2 + $0xd8] sm:$0xff]
        %v278 = vld [vmem:[#allocation2 + $0xe0] sm:$0xff]
        %v279 = vld [vmem:[#allocation2 + $0xe8] sm:$0xff]
        %v280 = vld [vmem:[#allocation2 + $0xf0] sm:$0xff]
        %v281 = vld [vmem:[#allocation2 + $0xf8] sm:$0xff]
        %v282 = vld [vmem:[#allocation2 + $0x100] sm:$0xff]
        %v283 = vld [vmem:[#allocation2 + $0x108] sm:$0xff]
        %v284 = vld [vmem:[#allocation2 + $0x110] sm:$0xff]
        %v285 = vld [vmem:[#allocation2 + $0x118] sm:$0xff]
        %v286 = vld [vmem:[#allocation2 + $0x120] sm:$0xff]
        %v287 = vld [vmem:[#allocation2 + $0x128] sm:$0xff]
        %v288 = vld [vmem:[#allocation2 + $0x130] sm:$0xff]
        %v289 = vld [vmem:[#allocation2 + $0x138] sm:$0xff]
        %v290 = vld [vmem:[#allocation2 + $0x140] sm:$0xff]
        %v291 = vld [vmem:[#allocation2 + $0x148] sm:$0xff]
        %v292 = vld [vmem:[#allocation2 + $0x150] sm:$0xff]
        %v293 = vld [vmem:[#allocation2 + $0x158] sm:$0xff]
        %v294 = vld [vmem:[#allocation2 + $0x160] sm:$0xff]
        %v295 = vld [vmem:[#allocation2 + $0x168] sm:$0xff]
        %v296 = vld [vmem:[#allocation2 + $0x170] sm:$0xff]
        %v297 = vld [vmem:[#allocation2 + $0x178] sm:$0xff]
        %vm298 = vcmask 523264
        %v300 = vsel %vm298, %v248, 0
        %v303 = vsel %vm298, %v249, 0
        %305 = vmatpush.msra.mxu0 0.0
        %306 = vmatpush.msra.mxu0 0.0
        %307 = vmatpush.msra.mxu0 0.0
        %308 = vmatpush.msra.mxu0 0.0
        %309 = vmatpush.msra.mxu0 0.0
        %310 = vmatpush.msra.mxu0 0.0
        %311 = vmatpush.msra.mxu0 0.0
        %312 = vmatpush.msra.mxu0 0.0
        %313 = vmatpush.msra.mxu0 %v292
        %314 = vmatpush.msra.mxu0 %v286
        %315 = vmatpush.msra.mxu0 %v280
        %316 = vmatpush.msra.mxu0 %v274
        %317 = vmatpush.msra.mxu0 %v268
        %318 = vmatpush.msra.mxu0 %v262
        %319 = vmatpush.msra.mxu0 %v256
        %320 = vmatpush.msra.mxu0 %v250
        %321 = vmatmul.f32.gmra.mxu0 %v300
        %v322 = vpop.f32.mrf.mxu0
        %v323 = vadd.f32 0.0, %v322
        %324 = vmatmul.f32.gmra.mxu0 %v303
        %v325 = vpop.f32.mrf.mxu0
        %v326 = vadd.f32 0.0, %v325
        %327 = vdwg.mxu0
        %328 = vmatpush.msra.mxu0 0.0
        %329 = vmatpush.msra.mxu0 0.0
        %330 = vmatpush.msra.mxu0 0.0
        %331 = vmatpush.msra.mxu0 0.0
        %332 = vmatpush.msra.mxu0 0.0
        %333 = vmatpush.msra.mxu0 0.0
        %334 = vmatpush.msra.mxu0 0.0
        %335 = vmatpush.msra.mxu0 0.0
        %336 = vmatpush.msra.mxu0 %v293
        %337 = vmatpush.msra.mxu0 %v287
        %338 = vmatpush.msra.mxu0 %v281
        %339 = vmatpush.msra.mxu0 %v275
        %340 = vmatpush.msra.mxu0 %v269
        %341 = vmatpush.msra.mxu0 %v263
        %342 = vmatpush.msra.mxu0 %v257
        %343 = vmatpush.msra.mxu0 %v251
        %344 = vmatmul.f32.gmra.mxu0 %v300
        %v345 = vpop.f32.mrf.mxu0
        %v346 = vadd.f32 0.0, %v345
        %347 = vmatmul.f32.gmra.mxu0 %v303
        %v348 = vpop.f32.mrf.mxu0
        %v349 = vadd.f32 0.0, %v348
        %350 = vdwg.mxu0
        %351 = vmatpush.msra.mxu0 0.0
        %352 = vmatpush.msra.mxu0 0.0
        %353 = vmatpush.msra.mxu0 0.0
        %354 = vmatpush.msra.mxu0 0.0
        %355 = vmatpush.msra.mxu0 0.0
        %356 = vmatpush.msra.mxu0 0.0
        %357 = vmatpush.msra.mxu0 0.0
        %358 = vmatpush.msra.mxu0 0.0
        %359 = vmatpush.msra.mxu0 %v294
        %360 = vmatpush.msra.mxu0 %v288
        %361 = vmatpush.msra.mxu0 %v282
        %362 = vmatpush.msra.mxu0 %v276
        %363 = vmatpush.msra.mxu0 %v270
        %364 = vmatpush.msra.mxu0 %v264
        %365 = vmatpush.msra.mxu0 %v258
        %366 = vmatpush.msra.mxu0 %v252
        %367 = vmatmul.f32.gmra.mxu0 %v300
        %v368 = vpop.f32.mrf.mxu0
        %v369 = vadd.f32 0.0, %v368
        %370 = vmatmul.f32.gmra.mxu0 %v303
        %v371 = vpop.f32.mrf.mxu0
        %v372 = vadd.f32 0.0, %v371
        %373 = vdwg.mxu0
        %374 = vmatpush.msra.mxu0 0.0
        %375 = vmatpush.msra.mxu0 0.0
        %376 = vmatpush.msra.mxu0 0.0
        %377 = vmatpush.msra.mxu0 0.0
        %378 = vmatpush.msra.mxu0 0.0
        %379 = vmatpush.msra.mxu0 0.0
        %380 = vmatpush.msra.mxu0 0.0
        %381 = vmatpush.msra.mxu0 0.0
        %382 = vmatpush.msra.mxu0 %v295
        %383 = vmatpush.msra.mxu0 %v289
        %384 = vmatpush.msra.mxu0 %v283
        %385 = vmatpush.msra.mxu0 %v277
        %386 = vmatpush.msra.mxu0 %v271
        %387 = vmatpush.msra.mxu0 %v265
        %388 = vmatpush.msra.mxu0 %v259
        %389 = vmatpush.msra.mxu0 %v253
        %390 = vmatmul.f32.gmra.mxu0 %v300
        %v391 = vpop.f32.mrf.mxu0
        %v392 = vadd.f32 0.0, %v391
        %393 = vmatmul.f32.gmra.mxu0 %v303
        %v394 = vpop.f32.mrf.mxu0
        %v395 = vadd.f32 0.0, %v394
        %396 = vdwg.mxu0
        %397 = vmatpush.msra.mxu0 0.0
        %398 = vmatpush.msra.mxu0 0.0
        %399 = vmatpush.msra.mxu0 0.0
        %400 = vmatpush.msra.mxu0 0.0
        %401 = vmatpush.msra.mxu0 0.0
        %402 = vmatpush.msra.mxu0 0.0
        %403 = vmatpush.msra.mxu0 0.0
        %404 = vmatpush.msra.mxu0 0.0
        %405 = vmatpush.msra.mxu0 %v296
        %406 = vmatpush.msra.mxu0 %v290
        %407 = vmatpush.msra.mxu0 %v284
        %408 = vmatpush.msra.mxu0 %v278
        %409 = vmatpush.msra.mxu0 %v272
        %410 = vmatpush.msra.mxu0 %v266
        %411 = vmatpush.msra.mxu0 %v260
        %412 = vmatpush.msra.mxu0 %v254
        %413 = vmatmul.f32.gmra.mxu0 %v300
        %v414 = vpop.f32.mrf.mxu0
        %v415 = vadd.f32 0.0, %v414
        %416 = vmatmul.f32.gmra.mxu0 %v303
        %v417 = vpop.f32.mrf.mxu0
        %v418 = vadd.f32 0.0, %v417
        %419 = vdwg.mxu0
        %420 = vmatpush.msra.mxu0 0.0
        %421 = vmatpush.msra.mxu0 0.0
        %422 = vmatpush.msra.mxu0 0.0
        %423 = vmatpush.msra.mxu0 0.0
        %424 = vmatpush.msra.mxu0 0.0
        %425 = vmatpush.msra.mxu0 0.0
        %426 = vmatpush.msra.mxu0 0.0
        %427 = vmatpush.msra.mxu0 0.0
        %428 = vmatpush.msra.mxu0 %v297
        %429 = vmatpush.msra.mxu0 %v291
        %430 = vmatpush.msra.mxu0 %v285
        %431 = vmatpush.msra.mxu0 %v279
        %432 = vmatpush.msra.mxu0 %v273
        %433 = vmatpush.msra.mxu0 %v267
        %434 = vmatpush.msra.mxu0 %v261
        %435 = vmatpush.msra.mxu0 %v255
        %436 = vmatmul.f32.gmra.mxu0 %v300
        %v437 = vpop.f32.mrf.mxu0
        %v438 = vadd.f32 0.0, %v437
        %439 = vmatmul.f32.gmra.mxu0 %v303
        %v440 = vpop.f32.mrf.mxu0
        %v441 = vadd.f32 0.0, %v440
        %442 = vdwg.mxu0
        %v443 = vld [vmem:[%s3] sm:$0x3]
        %v444 = vld [vmem:[%s246] sm:$0xff]
        %v445 = vld [vmem:[%s246 + $0x8] sm:$0xff]
        %v446 = vld [vmem:[%s246 + $0x10] sm:$0xff]
        %v447 = vld [vmem:[%s246 + $0x18] sm:$0xff]
        %vm448 = vcmask 130048
        %v450 = vsel %vm448, %v444, 0
        %v453 = vsel %vm448, %v445, 0
        %v456 = vsel %vm448, %v446, 0
        %v459 = vsel %vm448, %v447, 0
        %461 = vmatpush.msra.mxu0 0.0
        %462 = vmatpush.msra.mxu0 0.0
        %463 = vmatpush.msra.mxu0 0.0
        %464 = vmatpush.msra.mxu0 0.0
        %465 = vmatpush.msra.mxu0 0.0
        %466 = vmatpush.msra.mxu0 0.0
        %467 = vmatpush.msra.mxu0 0.0
        %468 = vmatpush.msra.mxu0 0.0
        %469 = vmatpush.msra.mxu0 0.0
        %470 = vmatpush.msra.mxu0 0.0
        %471 = vmatpush.msra.mxu0 0.0
        %472 = vmatpush.msra.mxu0 0.0
        %473 = vmatpush.msra.mxu0 0.0
        %474 = vmatpush.msra.mxu0 0.0
        %475 = vmatpush.msra.mxu0 %v326
        %476 = vmatpush.msra.mxu0 %v323
        %477 = vmatmul.f32.gmra.mxu0 %v450
        %v478 = vpop.f32.mrf.mxu0
        %v479 = vadd.f32 0.0, %v478
        %480 = vmatmul.f32.gmra.mxu0 %v453
        %v481 = vpop.f32.mrf.mxu0
        %v482 = vadd.f32 0.0, %v481
        %483 = vmatmul.f32.gmra.mxu0 %v456
        %v484 = vpop.f32.mrf.mxu0
        %v485 = vadd.f32 0.0, %v484
        %486 = vmatmul.f32.gmra.mxu0 %v459
        %v487 = vpop.f32.mrf.mxu0
        %v488 = vadd.f32 0.0, %v487
        %489 = vdwg.mxu0
        %490 = vmatpush.msra.mxu0 0.0
        %491 = vmatpush.msra.mxu0 0.0
        %492 = vmatpush.msra.mxu0 0.0
        %493 = vmatpush.msra.mxu0 0.0
        %494 = vmatpush.msra.mxu0 0.0
        %495 = vmatpush.msra.mxu0 0.0
        %496 = vmatpush.msra.mxu0 0.0
        %497 = vmatpush.msra.mxu0 0.0
        %498 = vmatpush.msra.mxu0 0.0
        %499 = vmatpush.msra.mxu0 0.0
        %500 = vmatpush.msra.mxu0 0.0
        %501 = vmatpush.msra.mxu0 0.0
        %502 = vmatpush.msra.mxu0 0.0
        %503 = vmatpush.msra.mxu0 0.0
        %504 = vmatpush.msra.mxu0 %v349
        %505 = vmatpush.msra.mxu0 %v346
        %506 = vmatmul.f32.gmra.mxu0 %v450
        %v507 = vpop.f32.mrf.mxu0
        %v508 = vadd.f32 0.0, %v507
        %509 = vmatmul.f32.gmra.mxu0 %v453
        %v510 = vpop.f32.mrf.mxu0
        %v511 = vadd.f32 0.0, %v510
        %512 = vmatmul.f32.gmra.mxu0 %v456
        %v513 = vpop.f32.mrf.mxu0
        %v514 = vadd.f32 0.0, %v513
        %515 = vmatmul.f32.gmra.mxu0 %v459
        %v516 = vpop.f32.mrf.mxu0
        %v517 = vadd.f32 0.0, %v516
        %518 = vdwg.mxu0
        %v520 = vperm.slane %v443, 0
        %v521 = vperm.slane %v443, 1
        %v524 = vadd.f32 %v520, %v479
        %v525 = vadd.f32 %v521, %v508
        %v526 = vadd.f32 %v520, %v482
        %v527 = vadd.f32 %v521, %v511
        %v528 = vadd.f32 %v520, %v485
        %v529 = vadd.f32 %v521, %v514
        %v530 = vadd.f32 %v520, %v488
        %v531 = vadd.f32 %v521, %v517
        %s532 = scalar_lea.vmem %s246, 32
        %v533 = vld [vmem:[%s532] sm:$0xff]
        %v534 = vld [vmem:[%s532 + $0x8] sm:$0xff]
        %v535 = vld [vmem:[%s532 + $0x10] sm:$0xff]
        %v536 = vld [vmem:[%s532 + $0x18] sm:$0xff]
        %v538 = vsel %vm448, %v533, 0
        %v541 = vsel %vm448, %v534, 0
        %v544 = vsel %vm448, %v535, 0
        %v547 = vsel %vm448, %v536, 0
        %549 = vmatpush.msra.mxu0 0.0
        %550 = vmatpush.msra.mxu0 0.0
        %551 = vmatpush.msra.mxu0 0.0
        %552 = vmatpush.msra.mxu0 0.0
        %553 = vmatpush.msra.mxu0 0.0
        %554 = vmatpush.msra.mxu0 0.0
        %555 = vmatpush.msra.mxu0 0.0
        %556 = vmatpush.msra.mxu0 0.0
        %557 = vmatpush.msra.mxu0 0.0
        %558 = vmatpush.msra.mxu0 0.0
        %559 = vmatpush.msra.mxu0 0.0
        %560 = vmatpush.msra.mxu0 0.0
        %561 = vmatpush.msra.mxu0 0.0
        %562 = vmatpush.msra.mxu0 0.0
        %563 = vmatpush.msra.mxu0 %v372
        %564 = vmatpush.msra.mxu0 %v369
        %565 = vmatmul.f32.gmra.mxu0 %v538
        %v566 = vpop.f32.mrf.mxu0
        %v567 = vadd.f32 0.0, %v566
        %568 = vmatmul.f32.gmra.mxu0 %v541
        %v569 = vpop.f32.mrf.mxu0
        %v570 = vadd.f32 0.0, %v569
        %571 = vmatmul.f32.gmra.mxu0 %v544
        %v572 = vpop.f32.mrf.mxu0
        %v573 = vadd.f32 0.0, %v572
        %574 = vmatmul.f32.gmra.mxu0 %v547
        %v575 = vpop.f32.mrf.mxu0
        %v576 = vadd.f32 0.0, %v575
        %577 = vdwg.mxu0
        %578 = vmatpush.msra.mxu0 0.0
        %579 = vmatpush.msra.mxu0 0.0
        %580 = vmatpush.msra.mxu0 0.0
        %581 = vmatpush.msra.mxu0 0.0
        %582 = vmatpush.msra.mxu0 0.0
        %583 = vmatpush.msra.mxu0 0.0
        %584 = vmatpush.msra.mxu0 0.0
        %585 = vmatpush.msra.mxu0 0.0
        %586 = vmatpush.msra.mxu0 0.0
        %587 = vmatpush.msra.mxu0 0.0
        %588 = vmatpush.msra.mxu0 0.0
        %589 = vmatpush.msra.mxu0 0.0
        %590 = vmatpush.msra.mxu0 0.0
        %591 = vmatpush.msra.mxu0 0.0
        %592 = vmatpush.msra.mxu0 %v395
        %593 = vmatpush.msra.mxu0 %v392
        %594 = vmatmul.f32.gmra.mxu0 %v538
        %v595 = vpop.f32.mrf.mxu0
        %v596 = vadd.f32 0.0, %v595
        %597 = vmatmul.f32.gmra.mxu0 %v541
        %v598 = vpop.f32.mrf.mxu0
        %v599 = vadd.f32 0.0, %v598
        %600 = vmatmul.f32.gmra.mxu0 %v544
        %v601 = vpop.f32.mrf.mxu0
        %v602 = vadd.f32 0.0, %v601
        %603 = vmatmul.f32.gmra.mxu0 %v547
        %v604 = vpop.f32.mrf.mxu0
        %v605 = vadd.f32 0.0, %v604
        %606 = vdwg.mxu0
        %v607 = vadd.f32 %v524, %v567
        %v608 = vadd.f32 %v525, %v596
        %v609 = vadd.f32 %v526, %v570
        %v610 = vadd.f32 %v527, %v599
        %v611 = vadd.f32 %v528, %v573
        %v612 = vadd.f32 %v529, %v602
        %v613 = vadd.f32 %v530, %v576
        %v614 = vadd.f32 %v531, %v605
        %s615 = scalar_lea.vmem %s246, 64
        %v616 = vld [vmem:[%s615] sm:$0xff]
        %v617 = vld [vmem:[%s615 + $0x8] sm:$0xff]
        %v618 = vld [vmem:[%s615 + $0x10] sm:$0xff]
        %v619 = vld [vmem:[%s615 + $0x18] sm:$0xff]
        %v621 = vsel %vm448, %v616, 0
        %v624 = vsel %vm448, %v617, 0
        %v627 = vsel %vm448, %v618, 0
        %v630 = vsel %vm448, %v619, 0
        %632 = vmatpush.msra.mxu0 0.0
        %633 = vmatpush.msra.mxu0 0.0
        %634 = vmatpush.msra.mxu0 0.0
        %635 = vmatpush.msra.mxu0 0.0
        %636 = vmatpush.msra.mxu0 0.0
        %637 = vmatpush.msra.mxu0 0.0
        %638 = vmatpush.msra.mxu0 0.0
        %639 = vmatpush.msra.mxu0 0.0
        %640 = vmatpush.msra.mxu0 0.0
        %641 = vmatpush.msra.mxu0 0.0
        %642 = vmatpush.msra.mxu0 0.0
        %643 = vmatpush.msra.mxu0 0.0
        %644 = vmatpush.msra.mxu0 0.0
        %645 = vmatpush.msra.mxu0 0.0
        %646 = vmatpush.msra.mxu0 %v418
        %647 = vmatpush.msra.mxu0 %v415
        %648 = vmatmul.f32.gmra.mxu0 %v621
        %v649 = vpop.f32.mrf.mxu0
        %v650 = vadd.f32 0.0, %v649
        %651 = vmatmul.f32.gmra.mxu0 %v624
        %v652 = vpop.f32.mrf.mxu0
        %v653 = vadd.f32 0.0, %v652
        %654 = vmatmul.f32.gmra.mxu0 %v627
        %v655 = vpop.f32.mrf.mxu0
        %v656 = vadd.f32 0.0, %v655
        %657 = vmatmul.f32.gmra.mxu0 %v630
        %v658 = vpop.f32.mrf.mxu0
        %v659 = vadd.f32 0.0, %v658
        %660 = vdwg.mxu0
        %661 = vmatpush.msra.mxu0 0.0
        %662 = vmatpush.msra.mxu0 0.0
        %663 = vmatpush.msra.mxu0 0.0
        %664 = vmatpush.msra.mxu0 0.0
        %665 = vmatpush.msra.mxu0 0.0
        %666 = vmatpush.msra.mxu0 0.0
        %667 = vmatpush.msra.mxu0 0.0
        %668 = vmatpush.msra.mxu0 0.0
        %669 = vmatpush.msra.mxu0 0.0
        %670 = vmatpush.msra.mxu0 0.0
        %671 = vmatpush.msra.mxu0 0.0
        %672 = vmatpush.msra.mxu0 0.0
        %673 = vmatpush.msra.mxu0 0.0
        %674 = vmatpush.msra.mxu0 0.0
        %675 = vmatpush.msra.mxu0 %v441
        %676 = vmatpush.msra.mxu0 %v438
        %677 = vmatmul.f32.gmra.mxu0 %v621
        %v678 = vpop.f32.mrf.mxu0
        %v679 = vadd.f32 0.0, %v678
        %680 = vmatmul.f32.gmra.mxu0 %v624
        %v681 = vpop.f32.mrf.mxu0
        %v682 = vadd.f32 0.0, %v681
        %683 = vmatmul.f32.gmra.mxu0 %v627
        %v684 = vpop.f32.mrf.mxu0
        %v685 = vadd.f32 0.0, %v684
        %686 = vmatmul.f32.gmra.mxu0 %v630
        %v687 = vpop.f32.mrf.mxu0
        %v688 = vadd.f32 0.0, %v687
        %689 = vdwg.mxu0
        %v690 = vadd.f32 %v607, %v650
        %v691 = vadd.f32 %v608, %v679
        %v692 = vadd.f32 %v609, %v653
        %v693 = vadd.f32 %v610, %v682
        %v694 = vadd.f32 %v611, %v656
        %v695 = vadd.f32 %v612, %v685
        %v696 = vadd.f32 %v613, %v659
        %v697 = vadd.f32 %v614, %v688
        %698 = vst [vmem:[%s236] sm:$0xff] %v690
        %699 = vst [vmem:[%s236 + $0x8] sm:$0xff] %v691
        %700 = vst [vmem:[%s236 + $0x10] sm:$0xff] %v692
        %701 = vst [vmem:[%s236 + $0x18] sm:$0xff] %v693
        %702 = vst [vmem:[%s236 + $0x20] sm:$0xff] %v694
        %703 = vst [vmem:[%s236 + $0x28] sm:$0xff] %v695
        %704 = vst [vmem:[%s236 + $0x30] sm:$0xff] %v696
        %705 = vst [vmem:[%s236 + $0x38] sm:$0xff] %v697
        %s706 = sand.u32 %s135, 1
        %s707 = scalar_lea.sflag [#allocation4], %s706
        %s708 = sand.u32 %s135, 1
        %s709 = smul.addr %s708, 64
        %s710 = scalar_lea.vmem [#allocation5], %s709
        // Predicated region
        $region41: #{tpu_custom_call.1} parent=35 // pred_check
          %p711 = pneg %p145
        $region42: #{tpu_custom_call.1} parent=35 // pred_check_branch
          %713 = sbr.rel (%p711) target = $region44
        $region43: #{tpu_custom_call.1} parent=35 // pred_region
          %s714 = smul.u32 4, %s24
          %716 = vsyncadd %s707, 0
          %s717 = smul.addr %s714, 2
          %s718 = smul.addr %s23, 8
          %s719 = sadd.s32 %s717, %s718
          %s720 = smul.addr %s719, 8
          %s721 = scalar_lea.hbm %s4, %s720
          %s722 = sshll.u32 %s710, 4
          %s723 = int_to_ptr.vmem [resolvable:$true] %s722
          %s724 = sshll.u32 %s721, 4
          %s725 = int_to_ptr.hbm [resolvable:$true] %s724
          %730 = dma.vmem_to_hbm [thread:$0]  %s723, 1024, %s725, %s707, 256, 256, 16
        $region44: #{tpu_custom_call.1} parent=35 // pred_fallthru
          _
      $region36: #{tpu_custom_call.1} parent=5 // pred_fallthru
        _
      %p731 = scmp.le.s32.totalorder 2, %s14
      // Predicated region
      $region45: #{tpu_custom_call.1} parent=5 // pred_check
        %p732 = pneg %p731
      $region46: #{tpu_custom_call.1} parent=5 // pred_check_branch
        %734 = sbr.rel (%p732) target = $region48
      $region47: #{tpu_custom_call.1} parent=5 // pred_region
        %s735 = ssub.s32 %s14, 2
        // Predicated region
        $region49: #{tpu_custom_call.1} parent=47 // pred_check
          %p736 = pneg %p151
        $region50: #{tpu_custom_call.1} parent=47 // pred_check_branch
          %738 = sbr.rel (%p736) target = $region52
        $region51: #{tpu_custom_call.1} parent=47 // pred_region
          %s739 = sand.u32 %s136, 1
          %s740 = scalar_lea.sflag [#allocation4], %s739
          %s741 = sand.u32 %s136, 1
          %s742 = smul.addr %s741, 64
          %s743 = scalar_lea.vmem [#allocation5], %s742
          %745 = dma.done %s740, 1024
        $region52: #{tpu_custom_call.1} parent=47 // pred_fallthru
          _
      $region48: #{tpu_custom_call.1} parent=5 // pred_fallthru
        _
    $region6: #{tpu_custom_call.1} parent=1 // loop_footer
      %s18 = sadd.s32 1, %s14
    $region7: #{tpu_custom_call.1} parent=1 // loop_footer_branch
      %13 = sbr.rel target = $region3
    $region8: #{tpu_custom_call.1} parent=1 // loop_exit
      _
    %746 = vsyncpa [#allocation3], 1
    %s747 = scalar_lea.sflag [#allocation3], 1
    %748 = vsyncpa %s747, 1
    %749 = vsyncpa [#allocation4], 1
    %s750 = scalar_lea.sflag [#allocation4], 1
    %751 = vsyncpa %s750, 1

</llo_original>
